<compile_context>
chip_gen: v7x
topology: tpu7x:2x2x1
jax: 0.10.0
libtpu: 0.0.40
codegen_flags: <defaults>
</compile_context>

<pallas_src>
import functools

import jax
import jax.numpy as jnp
from jax.experimental import pallas as pl
from jax.experimental.pallas import tpu as pltpu

MARGIN = 1.2


def _round_up(x, m):
    return (x + m - 1) // m * m


def _contrastive_kernel(emb_ref, lab_ref, out_ref, *, D, L, margin):
    # emb_ref: (TP, 2*D) -> row i = [anchor_i | positive_i]
    # lab_ref: (TP, 2*L) -> row i = [labels_anchor_i | labels_positive_i]
    e = emb_ref[...]
    anchor = e[:, :D].astype(jnp.float32)
    positive = e[:, D:].astype(jnp.float32)
    diff = anchor - positive
    d2 = jnp.sum(diff * diff, axis=-1, keepdims=True)        # (TP, 1)
    dist = jnp.sqrt(d2)                                       # (TP, 1)  (torch.norm)

    lab = lab_ref[...]
    eq = lab[:, :L] == lab[:, L:]                             # (TP, L)
    # Reference checks only the first two label components (item[0], item[1]).
    match = jnp.logical_and(eq[:, 0:1], eq[:, 1:2]).astype(jnp.float32)  # (TP, 1)

    hinge = jnp.maximum(jnp.float32(margin) - dist, 0.0)
    out_ref[...] = match * (dist * dist) + (1.0 - match) * (hinge * hinge)


def _choose_block_pairs(P, D, itemsize):
    # Target ~4 MiB per embedding tile (x2 pipeline buffers ~8 MiB resident),
    # comfortably under the scoped VMEM limit on v5e/v6e/v7x.
    target_bytes = 4 * 1024 * 1024
    tp = target_bytes // max(1, 2 * D * itemsize)
    tp = max(16, min(2048, tp))
    tp = (tp // 16) * 16                 # sublane-friendly for f32 and bf16
    tp = min(tp, _round_up(P, 16))       # don't exceed (padded) pair count
    return max(16, tp)


def contrastive_loss(embeddings, labels, margin=MARGIN):
    """Matches ContrastiveLoss.forward(embeddings, labels, device) -> scalar loss."""
    B, D = embeddings.shape
    assert B % 2 == 0, "batch must contain interleaved anchor/positive pairs"
    L = labels.shape[1]
    assert L >= 2, "reference accesses label components 0 and 1"
    P = B // 2

    # Free row-major reshapes: row i of the result = [row 2i | row 2i+1].
    emb_pairs = embeddings.reshape(P, 2 * D)
    lab_pairs = labels.astype(jnp.float32).reshape(P, 2 * L)

    tp = _choose_block_pairs(P, D, embeddings.dtype.itemsize)
    p_pad = _round_up(P, tp)
    if p_pad != P:
        emb_pairs = jnp.pad(emb_pairs, ((0, p_pad - P), (0, 0)))
        lab_pairs = jnp.pad(lab_pairs, ((0, p_pad - P), (0, 0)))

    grid = (p_pad // tp,)

    pair_loss = pl.pallas_call(
        functools.partial(_contrastive_kernel, D=D, L=L, margin=float(margin)),
        out_shape=jax.ShapeDtypeStruct((p_pad, 1), jnp.float32),
        grid=grid,
        in_specs=[
            pl.BlockSpec((tp, 2 * D), lambda i: (i, 0)),
            pl.BlockSpec((tp, 2 * L), lambda i: (i, 0)),
        ],
        out_specs=pl.BlockSpec((tp, 1), lambda i: (i, 0)),
        compiler_params=pltpu.CompilerParams(
            dimension_semantics=("parallel",),
            vmem_limit_bytes=32 * 1024 * 1024,
        ),
    )(emb_pairs, lab_pairs)

    # Tiny final reduction over the valid pairs (padding rows discarded).
    return jnp.mean(pair_loss[:P, 0])


if __name__ == "__main__":
    key = jax.random.PRNGKey(0)
    k_emb, k_lab = jax.random.split(key)

    # Small shapes consistent with the module: 4 anchor/positive pairs,
    # embedding dim 32, 2-component labels.
    batch, dim, n_label = 8, 32, 2
    embeddings = jax.random.normal(k_emb, (batch, dim), dtype=jnp.float32)
    labels = jax.random.bernoulli(
        k_lab, p=0.5, shape=(batch, n_label)
    ).astype(jnp.float32)

    loss = contrastive_loss(embeddings, labels, margin=MARGIN)
    jax.block_until_ready(loss)

    # Pure-JAX reference mirroring the PyTorch module exactly.
    anchor = embeddings[0::2]
    positive = embeddings[1::2]
    eq = labels[0::2] == labels[1::2]
    match = jnp.logical_and(eq[:, 0], eq[:, 1]).astype(jnp.float32)
    dist = jnp.sqrt(jnp.sum((anchor - positive) ** 2, axis=1))
    loss_ref = jnp.mean(
        match * dist ** 2
        + (1.0 - match) * jnp.maximum(MARGIN - dist, 0.0) ** 2
    )

    assert jnp.allclose(loss, loss_ref, atol=1e-5, rtol=1e-5), (loss, loss_ref)
    print("KERNEL_OK")
</pallas_src>

<mosaic_0001>
module attributes {stable_mosaic.version = 11 : i64} {
  func.func @_contrastive_kernel(%arg0: i32, %arg1: memref<16x64xf32, #tpu.memory_space<vmem>>, %arg2: memref<16x4xf32, #tpu.memory_space<vmem>>, %arg3: memref<16x1xf32, #tpu.memory_space<vmem>>) attributes {dimension_semantics = [#tpu.dimension_semantics<parallel>], iteration_bounds = array<i64: 1>, scalar_prefetch = 0 : i64, scratch_operands = 0 : i64, tpu.core_type = #tpu.core_type<tc>, window_params = [{transform_indices = @transform_0, window_bounds = array<i64: 16, 64>}, {transform_indices = @transform_1, window_bounds = array<i64: 16, 4>}, {transform_indices = @transform_2, window_bounds = array<i64: 16, 1>}]} {
    %c0 = arith.constant 0 : index
    %c0_0 = arith.constant 0 : index
    %0 = vector.load %arg1[%c0, %c0_0] : memref<16x64xf32, #tpu.memory_space<vmem>>, vector<16x64xf32>
    %1 = vector.extract_strided_slice %0 {offsets = [0, 0], sizes = [16, 32], strides = [1, 1]} : vector<16x64xf32> to vector<16x32xf32>
    %2 = vector.extract_strided_slice %0 {offsets = [0, 32], sizes = [16, 32], strides = [1, 1]} : vector<16x64xf32> to vector<16x32xf32>
    %3 = arith.subf %1, %2 : vector<16x32xf32>
    %4 = arith.mulf %3, %3 : vector<16x32xf32>
    %cst = arith.constant dense<0.000000e+00> : vector<16xf32>
    %5 = vector.multi_reduction <add>, %4, %cst [1] : vector<16x32xf32> to vector<16xf32>
    %6 = vector.shape_cast %5 : vector<16xf32> to vector<16x1xf32>
    %7 = math.sqrt %6 : vector<16x1xf32>
    %c0_1 = arith.constant 0 : index
    %c0_2 = arith.constant 0 : index
    %8 = vector.load %arg2[%c0_1, %c0_2] : memref<16x4xf32, #tpu.memory_space<vmem>>, vector<16x4xf32>
    %9 = vector.extract_strided_slice %8 {offsets = [0, 0], sizes = [16, 2], strides = [1, 1]} : vector<16x4xf32> to vector<16x2xf32>
    %10 = vector.extract_strided_slice %8 {offsets = [0, 2], sizes = [16, 2], strides = [1, 1]} : vector<16x4xf32> to vector<16x2xf32>
    %11 = arith.cmpf oeq, %9, %10 : vector<16x2xf32>
    %12 = vector.extract_strided_slice %11 {offsets = [0, 0], sizes = [16, 1], strides = [1, 1]} : vector<16x2xi1> to vector<16x1xi1>
    %13 = vector.extract_strided_slice %11 {offsets = [0, 1], sizes = [16, 1], strides = [1, 1]} : vector<16x2xi1> to vector<16x1xi1>
    %14 = arith.andi %12, %13 : vector<16x1xi1>
    %15 = arith.extui %14 : vector<16x1xi1> to vector<16x1xi32>
    %16 = arith.sitofp %15 : vector<16x1xi32> to vector<16x1xf32>
    %cst_3 = arith.constant 1.200000e+00 : f32
    %17 = vector.broadcast %cst_3 : f32 to vector<16x1xf32>
    %18 = arith.subf %17, %7 : vector<16x1xf32>
    %cst_4 = arith.constant 0.000000e+00 : f32
    %19 = vector.broadcast %cst_4 : f32 to vector<16x1xf32>
    %20 = arith.maximumf %18, %19 : vector<16x1xf32>
    %21 = arith.mulf %7, %7 : vector<16x1xf32>
    %22 = arith.mulf %16, %21 : vector<16x1xf32>
    %cst_5 = arith.constant 1.000000e+00 : f32
    %23 = vector.broadcast %cst_5 : f32 to vector<16x1xf32>
    %24 = arith.subf %23, %16 : vector<16x1xf32>
    %25 = arith.mulf %20, %20 : vector<16x1xf32>
    %26 = arith.mulf %24, %25 : vector<16x1xf32>
    %27 = arith.addf %22, %26 : vector<16x1xf32>
    %c0_6 = arith.constant 0 : index
    %c0_7 = arith.constant 0 : index
    %28 = vector.load %arg3[%c0_6, %c0_7] : memref<16x1xf32, #tpu.memory_space<vmem>>, vector<16x1xf32>
    tpu.vector_store %arg3[%c0_6, %c0_7], %27 {strides = array<i32>} : memref<16x1xf32, #tpu.memory_space<vmem>>, vector<16x1xf32>,
    return
  }
  func.func @transform_0(%arg0: i32) -> (i32, i32) {
    %c0_i32 = arith.constant 0 : i32
    %c0_i32_0 = arith.constant 0 : i32
    return %arg0, %c0_i32 : i32, i32
  }
  func.func @transform_1(%arg0: i32) -> (i32, i32) {
    %c0_i32 = arith.constant 0 : i32
    %c0_i32_0 = arith.constant 0 : i32
    return %arg0, %c0_i32 : i32, i32
  }
  func.func @transform_2(%arg0: i32) -> (i32, i32) {
    %c0_i32 = arith.constant 0 : i32
    %c0_i32_0 = arith.constant 0 : i32
    return %arg0, %c0_i32 : i32, i32
  }
}

</mosaic_0001>

<llo_original>
// kernel: tpu_custom_call.1
$region0: #{tpu_custom_call.1}
  #allocation0 [shape = 'u32[]', space=smem, size = 0x4, offset = 0x4, fixed_abs, tag = 'smem constant byte address 0x4 - core index']
  #allocation1 [shape = 'u32[144,128]{1,0:T(1,128)}', space=vmem, size = 0x12000, scoped, tag = 'internal scratch']
  %s0 = inlined_call_operand.vmem [shape: f32[16,64], index: 0, kind: input, shape index: {}]
  %s1 = inlined_call_operand.vmem [shape: f32[16,4], index: 1, kind: input, shape index: {}]
  %s2 = inlined_call_operand.vmem [shape: f32[16,1], index: 2, kind: output, shape index: {}]
  %s3 = sld [smem:[#allocation0]]
  $region18: #{tpu_custom_call.1} parent=0
    _
  %s5 = ssub.s32 1, %s3
  %s6 = scalar_select 0, %s5, %s3
  // Predicated region
  $region2: #{tpu_custom_call.1} parent=0 // pred_check
    _
  $region3: #{tpu_custom_call.1} parent=0 // pred_check_branch
    %8 = sbr.rel (0) target = $region5
  $region4: #{tpu_custom_call.1} parent=0 // pred_region
    _
  $region5: #{tpu_custom_call.1} parent=0 // pred_fallthru
    _
  // Predicated region
  $region6: #{tpu_custom_call.1} parent=0 // pred_check
    _
  $region7: #{tpu_custom_call.1} parent=0 // pred_check_branch
    %10 = sbr.rel (0) target = $region9
  $region8: #{tpu_custom_call.1} parent=0 // pred_region
    _
  $region9: #{tpu_custom_call.1} parent=0 // pred_fallthru
    _
  %v11 = vld [vmem:[%s0] sm:$0xff]
  %v12 = vld [vmem:[%s0 + $0x8] sm:$0xff]
  %15 = vrot.lane.b32.xlu0 %v11, 96
  %v16 = vpop.permute.xlu0 %15
  %17 = vrot.lane.b32.xlu0 %v12, 96
  %v18 = vpop.permute.xlu0 %17
  %v21 = vsub.f32 %v11, %v16
  %v22 = vsub.f32 %v12, %v18
  %v23 = vmul.f32 %v21, %v21
  %v24 = vmul.f32 %v22, %v22
  %vm25 = vcmask 261120
  %v26 = vsel %vm25, %v23, 0.0
  %27 = vadd.xlane.f32.xlu0 %v26
  %v28 = vpop.xlane.xlu0 %27
  %v29 = vsel %vm25, %v24, 0.0
  %30 = vadd.xlane.f32.xlu0 %v29
  %v31 = vpop.xlane.xlu0 %30
  %v32 = vrsqrt.pop %v28
  %v33 = vmul.f32 %v28, %v32
  %vm34 = vcmp.eq.f32.partialorder %v28, inf
  %v35 = vsel %vm34, %v28, %v33
  %vm36 = vcmp.eq.f32.partialorder %v28, 0.0
  %v37 = vand.u32 %v28, 2147483648
  %v38 = vsel %vm36, %v37, %v35
  %v39 = vrsqrt.pop %v31
  %v40 = vmul.f32 %v31, %v39
  %vm41 = vcmp.eq.f32.partialorder %v31, inf
  %v42 = vsel %vm41, %v31, %v40
  %vm43 = vcmp.eq.f32.partialorder %v31, 0.0
  %v44 = vand.u32 %v31, 2147483648
  %v45 = vsel %vm43, %v44, %v42
  %v46 = vld [vmem:[%s1] sm:$0xff]
  %v47 = vld [vmem:[%s1 + $0x8] sm:$0xff]
  %50 = vrot.lane.b32.xlu0 %v46, 126
  %v51 = vpop.permute.xlu0 %50
  %52 = vrot.lane.b32.xlu0 %v47, 126
  %v53 = vpop.permute.xlu0 %52
  %vm56 = vcmp.eq.f32.partialorder %v46, %v51
  %vm57 = vcmp.eq.f32.partialorder %v47, %v53
  %v58 = vsel %vm56, 1, 0
  %v59 = vsel %vm57, 1, 0
  %60 = vrot.lane.b32.xlu0 %v58, 127
  %v61 = vpop.permute.xlu0 %60
  %62 = vrot.lane.b32.xlu0 %v59, 127
  %v63 = vpop.permute.xlu0 %62
  %vm64 = vcmp.ne.s32.totalorder %v61, 0
  %vm65 = vcmp.ne.s32.totalorder %v63, 0
  %vm66 = vmand %vm56, %vm64
  %vm67 = vmand %vm57, %vm65
  %v68 = vsel %vm66, 1, 0
  %v69 = vsel %vm67, 1, 0
  %v70 = vcvt.s32.f32 %v68
  %v71 = vcvt.s32.f32 %v69
  %v72 = vsub.f32 1.2, %v38
  %v73 = vsub.f32 1.2, %v45
  %v74 = vmax.f32 %v72, 0.0
  %v75 = vmax.f32 %v73, 0.0
  %v76 = vmul.f32 %v38, %v38
  %v77 = vmul.f32 %v45, %v45
  %v78 = vmul.f32 %v70, %v76
  %v79 = vmul.f32 %v71, %v77
  %v80 = vsub.f32 1.0, %v70
  %v81 = vsub.f32 1.0, %v71
  %v82 = vmul.f32 %v74, %v74
  %v83 = vmul.f32 %v75, %v75
  %v84 = vmul.f32 %v80, %v82
  %v85 = vmul.f32 %v81, %v83
  %v86 = vadd.f32 %v78, %v84
  %v87 = vadd.f32 %v79, %v85
  %vm88 = vcmask 7168
  %89 = vst.msk [vmem:[%s2] sm:$0xff] %vm88, %v86
  %90 = vst.msk [vmem:[%s2 + $0x8] sm:$0xff] %vm88, %v87
  // Predicated region
  $region10: #{tpu_custom_call.1} parent=0 // pred_check
    _
  $region11: #{tpu_custom_call.1} parent=0 // pred_check_branch
    %92 = sbr.rel (0) target = $region13
  $region12: #{tpu_custom_call.1} parent=0 // pred_region
    _
  $region13: #{tpu_custom_call.1} parent=0 // pred_fallthru
    _
  // Predicated region
  $region14: #{tpu_custom_call.1} parent=0 // pred_check
    _
  $region15: #{tpu_custom_call.1} parent=0 // pred_check_branch
    %94 = sbr.rel (0) target = $region17
  $region16: #{tpu_custom_call.1} parent=0 // pred_region
    _
  $region17: #{tpu_custom_call.1} parent=0 // pred_fallthru
    _

</llo_original>
